<compile_context>
chip_gen: v7x
topology: tpu7x:2x2x1
jax: 0.10.0
libtpu: 0.0.40
codegen_flags: <defaults>
</compile_context>

<pallas_src>
import functools
import numpy as np

import jax
import jax.numpy as jnp
from jax.experimental import pallas as pl
from jax.experimental.pallas import tpu as pltpu  # noqa: F401  (not needed for this tiny fused kernel)

# ---------------- hyper-parameters (the `p.*` namespace) ----------------
NUM_ENT     = 256          # p.num_ent
NUM_REL     = 5            # p.num_rel   (relations are doubled -> 2*num_rel rows)
NUM_FACTORS = 3            # p.num_factors (K)
GCN_DIM     = 32           # p.gcn_dim == p.embed_dim
EMBED_DIM   = GCN_DIM
IK_H        = 8            # p.ik_h
IK_W        = 4            # p.ik_w      (ik_h * ik_w == embed_dim)
IPERM       = 2            # p.iperm
INUM_FILT   = 4            # p.inum_filt
IKER_SZ     = 3            # p.iker_sz
PAD         = IKER_SZ // 2
FLAT_SZ     = IK_H * (2 * IK_W) * INUM_FILT * IPERM   # 512
BATCH       = 4


# =====================================================================
# Fused Pallas kernel
# =====================================================================

def _fused_interacte_kernel(comb_ref, m1_ref, s1_ref, w2_ref, b2_ref,
                            att_ref, ent_ref, bias_ref, o_ref, *, B, K):
    """Fused InteractE decoder: (folded conv) -> (folded fc) -> attention score -> sigmoid.

    comb_ref : (K*B, 2E)     k-major [sub|rel] rows
    m1_ref   : (2E, FLAT_SZ) folded chequer + bn0 + circular-pad + conv + bn1 (linear part)
    s1_ref   : (1, FLAT_SZ)  folded shift
    w2_ref   : (FLAT_SZ, E)  folded fc + bn2 (linear part)
    b2_ref   : (1, E)        folded shift
    att_ref  : (K*B, 1)      softmax attention, k-major rows
    ent_ref  : (K, E, N_ENT) per-factor entity slabs (all_ent transposed)
    bias_ref : (1, N_ENT)
    o_ref    : (B, N_ENT)
    """
    # Stage 1: chequer + bn0 + circular pad + grouped conv + bn1, as one MXU matmul + ReLU.
    h1 = jnp.dot(comb_ref[...], m1_ref[...], preferred_element_type=jnp.float32)
    h1 = jnp.maximum(h1 + s1_ref[...], 0.0)                       # (K*B, FLAT_SZ)

    # Stage 2: fc + bn2, as one MXU matmul + ReLU (stays resident in VMEM/vregs).
    feat = jnp.dot(h1, w2_ref[...], preferred_element_type=jnp.float32)
    feat = jnp.maximum(feat + b2_ref[...], 0.0)                   # (K*B, E)

    # Stage 3: attention-weighted score against all entities.
    scaled = feat * att_ref[...]                                  # pre-scale by att[b,k]
    n_ent = o_ref.shape[1]
    acc = jnp.zeros((B, n_ent), jnp.float32)
    for k in range(K):
        # contiguous per-factor row block (k-major layout); equivalent to the single
        # (B, K*E) @ (K*E, N_ENT) contraction, expressed as K accumulated MXU pushes.
        acc = acc + jnp.dot(scaled[k * B:(k + 1) * B, :], ent_ref[k],
                            preferred_element_type=jnp.float32)
    # bias added once: softmax attention sums to 1.
    o_ref[...] = jax.nn.sigmoid(acc + bias_ref[...])


def interacte_fused(comb_km, m1, s1, w2, b2, att_km, ent_kt, bias2d):
    K, _, n_ent = ent_kt.shape
    B = comb_km.shape[0] // K
    return pl.pallas_call(
        functools.partial(_fused_interacte_kernel, B=B, K=K),
        out_shape=jax.ShapeDtypeStruct((B, n_ent), jnp.float32),
        # grid-free single invocation: every operand is a whole-array VMEM block
        # (total working set ~0.3 MiB << VMEM on v5e/v6e/v7x), output is lane-dense.
    )(comb_km, m1, s1, w2, b2, att_km, ent_kt, bias2d)


# =====================================================================
# Glue: chequer permutation, padding, parameter construction & folding
# =====================================================================

def get_chequer_perm(embed_dim, iperm, ik_h, ik_w, seed=0):
    rng = np.random.RandomState(seed)
    ent_perm = np.int32([rng.permutation(embed_dim) for _ in range(iperm)])
    rel_perm = np.int32([rng.permutation(embed_dim) for _ in range(iperm)])
    comb_idx = []
    for k in range(iperm):
        temp = []
        ent_idx, rel_idx = 0, 0
        for i in range(ik_h):
            for j in range(ik_w):
                if k % 2 == 0:
                    if i % 2 == 0:
                        temp.append(ent_perm[k, ent_idx]); ent_idx += 1
                        temp.append(rel_perm[k, rel_idx] + embed_dim); rel_idx += 1
                    else:
                        temp.append(rel_perm[k, rel_idx] + embed_dim); rel_idx += 1
                        temp.append(ent_perm[k, ent_idx]); ent_idx += 1
                elif i % 2 == 0:
                    temp.append(rel_perm[k, rel_idx] + embed_dim); rel_idx += 1
                    temp.append(ent_perm[k, ent_idx]); ent_idx += 1
                else:
                    temp.append(ent_perm[k, ent_idx]); ent_idx += 1
                    temp.append(rel_perm[k, rel_idx] + embed_dim); rel_idx += 1
        comb_idx.append(temp)
    return jnp.asarray(np.int32(comb_idx))   # (iperm, 2*embed_dim)


def circular_pad_chw(x, p):
    # matches torch circular_padding_chw: pad H (axis 2) then W (axis 3) circularly
    x = jnp.concatenate([x[..., -p:, :], x, x[..., :p, :]], axis=2)
    x = jnp.concatenate([x[..., -p:], x, x[..., :p]], axis=3)
    return x


def bn_fold(gamma, beta, mean, var, eps=1e-5):
    scale = gamma / jnp.sqrt(var + eps)
    shift = beta - mean * scale
    return scale, shift


def make_params(key):
    ks = jax.random.split(key, 20)

    def bn_params(k, c):
        k1, k2, k3, k4 = jax.random.split(k, 4)
        gamma = 1.0 + 0.1 * jax.random.normal(k1, (c,), jnp.float32)
        beta = 0.05 * jax.random.normal(k2, (c,), jnp.float32)
        mean = 0.02 * jax.random.normal(k3, (c,), jnp.float32)
        var = 1.0 + 0.1 * jax.random.uniform(k4, (c,), jnp.float32)
        return bn_fold(gamma, beta, mean, var)

    bn0_s, bn0_b = bn_params(ks[6], IPERM)
    bn1_s, bn1_b = bn_params(ks[7], IPERM * INUM_FILT)
    bn2_s, bn2_b = bn_params(ks[8], EMBED_DIM)

    fan = IKER_SZ * IKER_SZ
    params = {
        "init_embed": 0.1 * jax.random.normal(ks[0], (NUM_ENT, NUM_FACTORS * GCN_DIM), jnp.float32),
        "init_rel":   0.1 * jax.random.normal(ks[1], (2 * NUM_REL, GCN_DIM), jnp.float32),
        # TODO(synk): DisenLayer.rel_weight is not defined in the provided source; synthetic param.
        "rel_weight": 0.1 * jax.random.normal(ks[2], (2 * NUM_REL, NUM_FACTORS, GCN_DIM), jnp.float32),
        "conv_filt":  jnp.sqrt(2.0 / (fan + INUM_FILT * fan)) *
                      jax.random.normal(ks[3], (INUM_FILT, 1, IKER_SZ, IKER_SZ), jnp.float32),
        "w_fc":       jax.random.normal(ks[4], (EMBED_DIM, FLAT_SZ), jnp.float32) / np.sqrt(FLAT_SZ),
        "b_fc":       0.01 * jax.random.normal(ks[5], (EMBED_DIM,), jnp.float32),
        "bn0_s": bn0_s, "bn0_b": bn0_b,
        "bn1_s": bn1_s, "bn1_b": bn1_b,
        "bn2_s": bn2_s, "bn2_b": bn2_b,
        "bias_ent":   jnp.zeros((NUM_ENT,), jnp.float32),   # registered as zeros in __init__
        "chequer_perm": get_chequer_perm(EMBED_DIM, IPERM, IK_H, IK_W),
    }
    return params


def _conv_path_flat(params, comb):
    """chequer-gather + bn0 + circular pad + grouped conv + bn1 (NO ReLU), flattened NCHW.

    comb: (N, 2*EMBED_DIM) -> (N, FLAT_SZ).  This map is affine in `comb`, which is what the
    fold in `fold_params` exploits.  (bn0 is per-perm-channel, i.e. spatially constant, so the
    eval-mode affine fold is exact for circular padding.)
    """
    cheq = jnp.take(comb, params["chequer_perm"], axis=1)          # (N, P, 2E)
    x = cheq.reshape(-1, IPERM, 2 * IK_W, IK_H)                    # NCHW stack
    x = x * params["bn0_s"][None, :, None, None] + params["bn0_b"][None, :, None, None]
    xpad = circular_pad_chw(x, PAD)
    filt_rep = jnp.tile(params["conv_filt"], (IPERM, 1, 1, 1))     # torch .repeat(iperm,1,1,1)
    conv = jax.lax.conv_general_dilated(
        xpad, filt_rep, (1, 1), "VALID",
        dimension_numbers=("NCHW", "OIHW", "NCHW"), feature_group_count=IPERM)
    conv = conv * params["bn1_s"][None, :, None, None] + params["bn1_b"][None, :, None, None]
    return conv.reshape(-1, FLAT_SZ)


def fold_params(params):
    """One-time precompute of the fused-kernel operands (outside the per-step forward)."""
    two_e = 2 * EMBED_DIM
    # The conv path is affine in comb: L(c) = c @ M1 + shift1.
    shift1 = _conv_path_flat(params, jnp.zeros((1, two_e), jnp.float32))[0]        # (FLAT_SZ,)
    m1 = _conv_path_flat(params, jnp.eye(two_e, dtype=jnp.float32)) - shift1[None, :]  # (2E, FLAT_SZ)
    # fc + bn2 fold.
    w2 = params["w_fc"].T * params["bn2_s"][None, :]                               # (FLAT_SZ, E)
    b2 = params["b_fc"] * params["bn2_s"] + params["bn2_b"]                        # (E,)
    # Entity table in per-factor (K, E, N_ENT) layout, hoisted out of the forward.
    x_all = params["init_embed"].reshape(NUM_ENT, NUM_FACTORS, GCN_DIM)
    ent_kt = jnp.transpose(x_all, (1, 2, 0))                                       # (K, E, N_ENT)
    return {
        "m1": m1, "shift1": shift1[None, :],
        "w2": w2, "b2": b2[None, :],
        "ent_kt": ent_kt, "bias2d": params["bias_ent"][None, :],
    }


def _embed_and_attention(params, sub, rel):
    """test_base (no_enc) embedding lookup + 'dot_rel' attention (tiny; kept in glue)."""
    B = sub.shape[0]
    x_all = params["init_embed"].reshape(NUM_ENT, NUM_FACTORS, GCN_DIM)
    sub3 = x_all[sub]                                             # (B, K, E)
    rel_row = params["init_rel"][rel]                             # (B, E)
    rel3 = jnp.broadcast_to(rel_row[:, None, :], (B, NUM_FACTORS, GCN_DIM))
    rel_w = params["rel_weight"][rel]                             # (B, K, E)
    logits = jnp.sum(sub3 * rel_w * rel3, axis=-1)
    logits = jnp.where(logits > 0, logits, 0.2 * logits)          # LeakyReLU(0.2)
    att = jax.nn.softmax(logits, axis=-1)                         # (B, K)
    return x_all, sub3, rel3, att


# =====================================================================
# Forward (fused Pallas path) and pure-JAX reference
# =====================================================================

@jax.jit
def sodgo_interacte_forward(params, folded, sub, rel):
    B = sub.shape[0]
    x_all, sub3, rel3, att = _embed_and_attention(params, sub, rel)

    # k-major row layout so per-factor row blocks are contiguous inside the kernel.
    sub_km = jnp.transpose(sub3, (1, 0, 2)).reshape(NUM_FACTORS * B, GCN_DIM)
    rel_km = jnp.transpose(rel3, (1, 0, 2)).reshape(NUM_FACTORS * B, GCN_DIM)
    comb_km = jnp.concatenate([sub_km, rel_km], axis=1)           # (K*B, 2E)
    att_km = att.T.reshape(NUM_FACTORS * B, 1)                    # (K*B, 1)

    pred = interacte_fused(comb_km, folded["m1"], folded["shift1"],
                           folded["w2"], folded["b2"],
                           att_km, folded["ent_kt"], folded["bias2d"])   # (B, NUM_ENT)
    corr = jnp.float32(0.0)                                       # test_base returns 0.0
    return pred, corr, x_all


@jax.jit
def reference_forward(params, sub, rel):
    """Pure-JAX reference of the same forward pass (un-folded conv path), for checking."""
    B = sub.shape[0]
    x_all, sub3, rel3, att = _embed_and_attention(params, sub, rel)

    sub_flat = sub3.reshape(B * NUM_FACTORS, GCN_DIM)
    rel_flat = rel3.reshape(B * NUM_FACTORS, GCN_DIM)
    comb = jnp.concatenate([sub_flat, rel_flat], axis=1)          # (B*K, 2E), b-major
    flat = jnp.maximum(_conv_path_flat(params, comb), 0.0)        # conv + bn1 + ReLU
    y = flat @ params["w_fc"].T + params["b_fc"]
    y = jnp.maximum(y * params["bn2_s"] + params["bn2_b"], 0.0)   # fc + bn2 + ReLU
    feat3 = y.reshape(B, NUM_FACTORS, EMBED_DIM)

    s = jnp.einsum("bkf,nkf->bkn", feat3, x_all) + params["bias_ent"][None, None, :]
    pred = jax.nn.sigmoid(jnp.einsum("bk,bkn->bn", att, s))
    return pred


if __name__ == "__main__":
    key = jax.random.PRNGKey(0)
    pkey, skey, rkey = jax.random.split(key, 3)
    params = make_params(pkey)
    folded = fold_params(params)                                  # one-time setup fold

    sub = jax.random.randint(skey, (BATCH,), 0, NUM_ENT, dtype=jnp.int32)
    rel = jax.random.randint(rkey, (BATCH,), 0, 2 * NUM_REL, dtype=jnp.int32)

    pred, corr, all_ent = sodgo_interacte_forward(params, folded, sub, rel)
    pred = jax.block_until_ready(pred)

    pred_ref = jax.block_until_ready(reference_forward(params, sub, rel))

    assert pred.shape == (BATCH, NUM_ENT), pred.shape
    assert all_ent.shape == (NUM_ENT, NUM_FACTORS, GCN_DIM), all_ent.shape
    assert bool(jnp.all(jnp.isfinite(pred)))
    assert bool(jnp.allclose(pred, pred_ref, atol=1e-2, rtol=1e-2)), float(
        jnp.max(jnp.abs(pred - pred_ref)))

    print("KERNEL_OK")
</pallas_src>

<mosaic_0001>
module attributes {stable_mosaic.version = 11 : i64} {
  func.func @_fused_interacte_kernel(%arg0: memref<12x64xf32, #tpu.memory_space<vmem>>, %arg1: memref<64x512xf32, #tpu.memory_space<vmem>>, %arg2: memref<1x512xf32, #tpu.memory_space<vmem>>, %arg3: memref<512x32xf32, #tpu.memory_space<vmem>>, %arg4: memref<1x32xf32, #tpu.memory_space<vmem>>, %arg5: memref<12x1xf32, #tpu.memory_space<vmem>>, %arg6: memref<3x32x256xf32, #tpu.memory_space<vmem>>, %arg7: memref<1x256xf32, #tpu.memory_space<vmem>>, %arg8: memref<4x256xf32, #tpu.memory_space<vmem>>) attributes {dimension_semantics = [], scalar_prefetch = 0 : i64, scratch_operands = 0 : i64, tpu.core_type = #tpu.core_type<tc>} {
    %c0 = arith.constant 0 : index
    %c0_0 = arith.constant 0 : index
    %0 = vector.load %arg0[%c0, %c0_0] : memref<12x64xf32, #tpu.memory_space<vmem>>, vector<12x64xf32>
    %c0_1 = arith.constant 0 : index
    %c0_2 = arith.constant 0 : index
    %1 = vector.load %arg1[%c0_1, %c0_2] : memref<64x512xf32, #tpu.memory_space<vmem>>, vector<64x512xf32>
    %cst = arith.constant dense<0.000000e+00> : vector<12x512xf32>
    %2 = tpu.matmul %0, %1, %cst {dimension_numbers = #tpu.dot_dimension_numbers<[1], [0], [0], [1], [0, 0, 1, 1], [], []>} : vector<12x64xf32>, vector<64x512xf32>, vector<12x512xf32> -> vector<12x512xf32>
    %c0_3 = arith.constant 0 : index
    %c0_4 = arith.constant 0 : index
    %3 = vector.load %arg2[%c0_3, %c0_4] : memref<1x512xf32, #tpu.memory_space<vmem>>, vector<1x512xf32>
    %4 = vector.broadcast %3 : vector<1x512xf32> to vector<12x512xf32>
    %5 = arith.addf %2, %4 : vector<12x512xf32>
    %cst_5 = arith.constant 0.000000e+00 : f32
    %6 = vector.broadcast %cst_5 : f32 to vector<12x512xf32>
    %7 = arith.maximumf %5, %6 : vector<12x512xf32>
    %c0_6 = arith.constant 0 : index
    %c0_7 = arith.constant 0 : index
    %8 = vector.load %arg3[%c0_6, %c0_7] : memref<512x32xf32, #tpu.memory_space<vmem>>, vector<512x32xf32>
    %cst_8 = arith.constant dense<0.000000e+00> : vector<12x32xf32>
    %9 = tpu.matmul %7, %8, %cst_8 {dimension_numbers = #tpu.dot_dimension_numbers<[1], [0], [0], [1], [0, 0, 1, 1], [], []>} : vector<12x512xf32>, vector<512x32xf32>, vector<12x32xf32> -> vector<12x32xf32>
    %c0_9 = arith.constant 0 : index
    %c0_10 = arith.constant 0 : index
    %10 = vector.load %arg4[%c0_9, %c0_10] : memref<1x32xf32, #tpu.memory_space<vmem>>, vector<1x32xf32>
    %11 = vector.broadcast %10 : vector<1x32xf32> to vector<12x32xf32>
    %12 = arith.addf %9, %11 : vector<12x32xf32>
    %cst_11 = arith.constant 0.000000e+00 : f32
    %13 = vector.broadcast %cst_11 : f32 to vector<12x32xf32>
    %14 = arith.maximumf %12, %13 : vector<12x32xf32>
    %c0_12 = arith.constant 0 : index
    %c0_13 = arith.constant 0 : index
    %15 = vector.load %arg5[%c0_12, %c0_13] : memref<12x1xf32, #tpu.memory_space<vmem>>, vector<12x1xf32>
    %16 = vector.broadcast %15 : vector<12x1xf32> to vector<12x32xf32>
    %17 = arith.mulf %14, %16 : vector<12x32xf32>
    %cst_14 = arith.constant 0.000000e+00 : f32
    %18 = vector.broadcast %cst_14 : f32 to vector<4x256xf32>
    %19 = vector.extract_strided_slice %17 {offsets = [0, 0], sizes = [4, 32], strides = [1, 1]} : vector<12x32xf32> to vector<4x32xf32>
    %c0_15 = arith.constant 0 : index
    %c0_16 = arith.constant 0 : index
    %c0_17 = arith.constant 0 : index
    %20 = vector.load %arg6[%c0_15, %c0_16, %c0_17] : memref<3x32x256xf32, #tpu.memory_space<vmem>>, vector<1x32x256xf32>
    %21 = vector.shape_cast %20 : vector<1x32x256xf32> to vector<32x256xf32>
    %cst_18 = arith.constant dense<0.000000e+00> : vector<4x256xf32>
    %22 = tpu.matmul %19, %21, %cst_18 {dimension_numbers = #tpu.dot_dimension_numbers<[1], [0], [0], [1], [0, 0, 1, 1], [], []>} : vector<4x32xf32>, vector<32x256xf32>, vector<4x256xf32> -> vector<4x256xf32>
    %23 = arith.addf %18, %22 : vector<4x256xf32>
    %24 = vector.extract_strided_slice %17 {offsets = [4, 0], sizes = [4, 32], strides = [1, 1]} : vector<12x32xf32> to vector<4x32xf32>
    %c1 = arith.constant 1 : index
    %c0_19 = arith.constant 0 : index
    %c0_20 = arith.constant 0 : index
    %25 = vector.load %arg6[%c1, %c0_19, %c0_20] : memref<3x32x256xf32, #tpu.memory_space<vmem>>, vector<1x32x256xf32>
    %26 = vector.shape_cast %25 : vector<1x32x256xf32> to vector<32x256xf32>
    %cst_21 = arith.constant dense<0.000000e+00> : vector<4x256xf32>
    %27 = tpu.matmul %24, %26, %cst_21 {dimension_numbers = #tpu.dot_dimension_numbers<[1], [0], [0], [1], [0, 0, 1, 1], [], []>} : vector<4x32xf32>, vector<32x256xf32>, vector<4x256xf32> -> vector<4x256xf32>
    %28 = arith.addf %23, %27 : vector<4x256xf32>
    %29 = vector.extract_strided_slice %17 {offsets = [8, 0], sizes = [4, 32], strides = [1, 1]} : vector<12x32xf32> to vector<4x32xf32>
    %c2 = arith.constant 2 : index
    %c0_22 = arith.constant 0 : index
    %c0_23 = arith.constant 0 : index
    %30 = vector.load %arg6[%c2, %c0_22, %c0_23] : memref<3x32x256xf32, #tpu.memory_space<vmem>>, vector<1x32x256xf32>
    %31 = vector.shape_cast %30 : vector<1x32x256xf32> to vector<32x256xf32>
    %cst_24 = arith.constant dense<0.000000e+00> : vector<4x256xf32>
    %32 = tpu.matmul %29, %31, %cst_24 {dimension_numbers = #tpu.dot_dimension_numbers<[1], [0], [0], [1], [0, 0, 1, 1], [], []>} : vector<4x32xf32>, vector<32x256xf32>, vector<4x256xf32> -> vector<4x256xf32>
    %33 = arith.addf %28, %32 : vector<4x256xf32>
    %c0_25 = arith.constant 0 : index
    %c0_26 = arith.constant 0 : index
    %34 = vector.load %arg7[%c0_25, %c0_26] : memref<1x256xf32, #tpu.memory_space<vmem>>, vector<1x256xf32>
    %35 = vector.broadcast %34 : vector<1x256xf32> to vector<4x256xf32>
    %36 = arith.addf %33, %35 : vector<4x256xf32>
    %37 = arith.negf %36 : vector<4x256xf32>
    %38 = math.exp %37 : vector<4x256xf32>
    %cst_27 = arith.constant 1.000000e+00 : f32
    %39 = vector.broadcast %cst_27 : f32 to vector<4x256xf32>
    %40 = arith.addf %39, %38 : vector<4x256xf32>
    %41 = arith.divf %39, %40 : vector<4x256xf32>
    %c0_28 = arith.constant 0 : index
    %c0_29 = arith.constant 0 : index
    %42 = vector.load %arg8[%c0_28, %c0_29] : memref<4x256xf32, #tpu.memory_space<vmem>>, vector<4x256xf32>
    tpu.vector_store %arg8[%c0_28, %c0_29], %41 {strides = array<i32>} : memref<4x256xf32, #tpu.memory_space<vmem>>, vector<4x256xf32>,
    return
  }
}

</mosaic_0001>

<llo_original>
// kernel: sodgo_interacte_forward.1
$region0: #{sodgo_interacte_forward.1}
  #allocation0 [shape = 'u32[]', space=smem, size = 0x4, offset = 0x4, fixed_abs, tag = 'smem constant byte address 0x4 - core index']
  #allocation1 [shape = 'u32[144,128]{1,0:T(1,128)}', space=vmem, size = 0x12000, scoped, tag = 'internal scratch']
  %s0 = inlined_call_operand.vmem [shape: f32[12,64], index: 0, kind: input, shape index: {}]
  %s1 = inlined_call_operand.vmem [shape: f32[64,512], index: 1, kind: input, shape index: {}]
  %s2 = inlined_call_operand.vmem [shape: f32[1,512], index: 2, kind: input, shape index: {}]
  %s3 = inlined_call_operand.vmem [shape: f32[512,32], index: 3, kind: input, shape index: {}]
  %s4 = inlined_call_operand.vmem [shape: f32[1,32], index: 4, kind: input, shape index: {}]
  %s5 = inlined_call_operand.vmem [shape: f32[12,1], index: 5, kind: input, shape index: {}]
  %s6 = inlined_call_operand.vmem [shape: f32[3,32,256], index: 6, kind: input, shape index: {}]
  %s7 = inlined_call_operand.vmem [shape: f32[1,256], index: 7, kind: input, shape index: {}]
  %s8 = inlined_call_operand.hbm [shape: f32[4,256], index: 8, kind: output, shape index: {}]
  %s9 = sld [smem:[#allocation0]]
  $region42: #{sodgo_interacte_forward.1} parent=0
    _
  %s11 = ssub.s32 1, %s9
  %s12 = scalar_select 0, %s11, %s9
  $region1: #{sodgo_interacte_forward.1} parent=0
    #allocation2 [shape = 'u8[4096]{0}', space=vmem, size = 0x1000, scoped, tag = 'output window, operand 0, single buffered']
    #allocation3 [shape = 's32[1]{0}', space=sflag, size = 0x4, scoped, tag = 'scoped memory for sodgo_interacte_forward.1']
    %13 = vsyncpa [#allocation3], 0
    // Predicated region
    $region2: #{sodgo_interacte_forward.1} parent=1 // pred_check
      _
    $region3: #{sodgo_interacte_forward.1} parent=1 // pred_check_branch
      %15 = sbr.rel (0) target = $region5
    $region4: #{sodgo_interacte_forward.1} parent=1 // pred_region
      _
    $region5: #{sodgo_interacte_forward.1} parent=1 // pred_fallthru
      _
    // Predicated region
    $region6: #{sodgo_interacte_forward.1} parent=1 // pred_check
      _
    $region7: #{sodgo_interacte_forward.1} parent=1 // pred_check_branch
      %17 = sbr.rel (0) target = $region9
    $region8: #{sodgo_interacte_forward.1} parent=1 // pred_region
      _
    $region9: #{sodgo_interacte_forward.1} parent=1 // pred_fallthru
      _
    // Predicated region
    $region10: #{sodgo_interacte_forward.1} parent=1 // pred_check
      _
    $region11: #{sodgo_interacte_forward.1} parent=1 // pred_check_branch
      %19 = sbr.rel (0) target = $region13
    $region12: #{sodgo_interacte_forward.1} parent=1 // pred_region
      _
    $region13: #{sodgo_interacte_forward.1} parent=1 // pred_fallthru
      _
    // Predicated region
    $region14: #{sodgo_interacte_forward.1} parent=1 // pred_check
      _
    $region15: #{sodgo_interacte_forward.1} parent=1 // pred_check_branch
      %21 = sbr.rel (0) target = $region17
    $region16: #{sodgo_interacte_forward.1} parent=1 // pred_region
      _
    $region17: #{sodgo_interacte_forward.1} parent=1 // pred_fallthru
      _
    // Predicated region
    $region18: #{sodgo_interacte_forward.1} parent=1 // pred_check
      _
    $region19: #{sodgo_interacte_forward.1} parent=1 // pred_check_branch
      %23 = sbr.rel (0) target = $region21
    $region20: #{sodgo_interacte_forward.1} parent=1 // pred_region
      _
    $region21: #{sodgo_interacte_forward.1} parent=1 // pred_fallthru
      _
    // Predicated region
    $region22: #{sodgo_interacte_forward.1} parent=1 // pred_check
      _
    $region23: #{sodgo_interacte_forward.1} parent=1 // pred_check_branch
      %25 = sbr.rel (0) target = $region25
    $region24: #{sodgo_interacte_forward.1} parent=1 // pred_region
      _
    $region25: #{sodgo_interacte_forward.1} parent=1 // pred_fallthru
      _
    // Predicated region
    $region26: #{sodgo_interacte_forward.1} parent=1 // pred_check
      _
    $region27: #{sodgo_interacte_forward.1} parent=1 // pred_check_branch
      %27 = sbr.rel (0) target = $region29
    $region28: #{sodgo_interacte_forward.1} parent=1 // pred_region
      _
    $region29: #{sodgo_interacte_forward.1} parent=1 // pred_fallthru
      _
    // Predicated region
    $region30: #{sodgo_interacte_forward.1} parent=1 // pred_check
      _
    $region31: #{sodgo_interacte_forward.1} parent=1 // pred_check_branch
      %29 = sbr.rel (0) target = $region33
    $region32: #{sodgo_interacte_forward.1} parent=1 // pred_region
      _
    $region33: #{sodgo_interacte_forward.1} parent=1 // pred_fallthru
      _
    %v30 = vld [vmem:[%s0] sm:$0xff]
    %v31 = vld [vmem:[%s0 + $0x8] sm:$0xf]
    %v32 = vld [vmem:[%s1] sm:$0xff]
    %v33 = vld [vmem:[%s1 + $0x8] sm:$0xff]
    %v34 = vld [vmem:[%s1 + $0x10] sm:$0xff]
    %v35 = vld [vmem:[%s1 + $0x18] sm:$0xff]
    %v36 = vld [vmem:[%s1 + $0x20] sm:$0xff]
    %v37 = vld [vmem:[%s1 + $0x28] sm:$0xff]
    %v38 = vld [vmem:[%s1 + $0x30] sm:$0xff]
    %v39 = vld [vmem:[%s1 + $0x38] sm:$0xff]
    %v40 = vld [vmem:[%s1 + $0x40] sm:$0xff]
    %v41 = vld [vmem:[%s1 + $0x48] sm:$0xff]
    %v42 = vld [vmem:[%s1 + $0x50] sm:$0xff]
    %v43 = vld [vmem:[%s1 + $0x58] sm:$0xff]
    %v44 = vld [vmem:[%s1 + $0x60] sm:$0xff]
    %v45 = vld [vmem:[%s1 + $0x68] sm:$0xff]
    %v46 = vld [vmem:[%s1 + $0x70] sm:$0xff]
    %v47 = vld [vmem:[%s1 + $0x78] sm:$0xff]
    %v48 = vld [vmem:[%s1 + $0x80] sm:$0xff]
    %v49 = vld [vmem:[%s1 + $0x88] sm:$0xff]
    %v50 = vld [vmem:[%s1 + $0x90] sm:$0xff]
    %v51 = vld [vmem:[%s1 + $0x98] sm:$0xff]
    %v52 = vld [vmem:[%s1 + $0xa0] sm:$0xff]
    %v53 = vld [vmem:[%s1 + $0xa8] sm:$0xff]
    %v54 = vld [vmem:[%s1 + $0xb0] sm:$0xff]
    %v55 = vld [vmem:[%s1 + $0xb8] sm:$0xff]
    %v56 = vld [vmem:[%s1 + $0xc0] sm:$0xff]
    %v57 = vld [vmem:[%s1 + $0xc8] sm:$0xff]
    %v58 = vld [vmem:[%s1 + $0xd0] sm:$0xff]
    %v59 = vld [vmem:[%s1 + $0xd8] sm:$0xff]
    %v60 = vld [vmem:[%s1 + $0xe0] sm:$0xff]
    %v61 = vld [vmem:[%s1 + $0xe8] sm:$0xff]
    %v62 = vld [vmem:[%s1 + $0xf0] sm:$0xff]
    %v63 = vld [vmem:[%s1 + $0xf8] sm:$0xff]
    %v64 = vld [vmem:[%s2] sm:$0xf]
    %v66 = vlaneseq
    %v67 = vshrl.u32 %v66, 7
    %v68 = vsub.s32 0, %v67
    %v69 = vrot.slane %v64, %v68
    %v70 = vlaneseq
    %v71 = vshrl.u32 %v70, 7
    %v72 = vsub.s32 1, %v71
    %v73 = vrot.slane %v64, %v72
    %v74 = vlaneseq
    %v75 = vshrl.u32 %v74, 7
    %v76 = vsub.s32 2, %v75
    %v77 = vrot.slane %v64, %v76
    %v78 = vlaneseq
    %v79 = vshrl.u32 %v78, 7
    %v80 = vsub.s32 3, %v79
    %v81 = vrot.slane %v64, %v80
    %vm86 = vcmask 523264
    %v88 = vsel %vm86, %v30, 0
    %v91 = vsel %vm86, %v31, 0
    %93 = vmatprep.subr.mxu0 %v33
    %94 = vmatpush1.msra.mxu0 %v32
    %95 = vmatprep.subr.mxu0 %v37
    %96 = vmatpush1.msra.mxu0 %v36
    %97 = vmatprep.subr.mxu0 %v41
    %98 = vmatpush1.msra.mxu0 %v40
    %99 = vmatprep.subr.mxu0 %v45
    %100 = vmatpush1.msra.mxu0 %v44
    %101 = vmatprep.subr.mxu0 %v49
    %102 = vmatpush1.msra.mxu0 %v48
    %103 = vmatprep.subr.mxu0 %v53
    %104 = vmatpush1.msra.mxu0 %v52
    %105 = vmatprep.subr.mxu0 %v57
    %106 = vmatpush1.msra.mxu0 %v56
    %107 = vmatprep.subr.mxu0 %v61
    %108 = vmatpush1.msra.mxu0 %v60
    %109 = vmatprep.subr.mxu0 0.0
    %110 = vmatpush1.msra.mxu0 0.0
    %111 = vmatprep.subr.mxu0 0.0
    %112 = vmatpush1.msra.mxu0 0.0
    %113 = vmatprep.subr.mxu0 0.0
    %114 = vmatpush1.msra.mxu0 0.0
    %115 = vmatprep.subr.mxu0 0.0
    %116 = vmatpush1.msra.mxu0 0.0
    %117 = vmatprep.subr.mxu0 0.0
    %118 = vmatpush1.msra.mxu0 0.0
    %119 = vmatprep.subr.mxu0 0.0
    %120 = vmatpush1.msra.mxu0 0.0
    %121 = vmatprep.subr.mxu0 0.0
    %122 = vmatpush1.msra.mxu0 0.0
    %123 = vmatprep.subr.mxu0 0.0
    %124 = vmatpush1.msra.mxu0 0.0
    %125 = vmatprep.subr.mxu0 0.0
    %126 = vmatpush1.msra.mxu0 0.0
    %127 = vmatprep.subr.mxu0 0.0
    %128 = vmatpush1.msra.mxu0 0.0
    %129 = vmatprep.subr.mxu0 0.0
    %130 = vmatpush1.msra.mxu0 0.0
    %131 = vmatprep.subr.mxu0 0.0
    %132 = vmatpush1.msra.mxu0 0.0
    %133 = vmatprep.subr.mxu0 0.0
    %134 = vmatpush1.msra.mxu0 0.0
    %135 = vmatprep.subr.mxu0 0.0
    %136 = vmatpush1.msra.mxu0 0.0
    %137 = vmatprep.subr.mxu0 0.0
    %138 = vmatpush1.msra.mxu0 0.0
    %139 = vmatprep.subr.mxu0 0.0
    %140 = vmatpush1.msra.mxu0 0.0
    %141 = vmatprep.subr.mxu0 0.0
    %142 = vmatpush1.msra.mxu0 0.0
    %143 = vmatprep.subr.mxu0 0.0
    %144 = vmatpush1.msra.mxu0 0.0
    %145 = vmatprep.subr.mxu0 0.0
    %146 = vmatpush1.msra.mxu0 0.0
    %147 = vmatprep.subr.mxu0 0.0
    %148 = vmatpush1.msra.mxu0 0.0
    %149 = vmatprep.subr.mxu0 0.0
    %150 = vmatpush1.msra.mxu0 0.0
    %151 = vmatprep.subr.mxu0 0.0
    %152 = vmatpush1.msra.mxu0 0.0
    %153 = vmatprep.subr.mxu0 0.0
    %154 = vmatpush1.msra.mxu0 0.0
    %155 = vmatprep.subr.mxu0 0.0
    %156 = vmatpush1.msra.mxu0 0.0
    %157 = vmatprep.mubr.f32.mxu0 0.0
    %158 = vmatmul.mubr.f32.gmra.mrb[0].mxu0 %v88
    %v159 = vpop.f32.mrb[0].mxu0
    %v160 = vadd.f32 %v69, %v159
    %v161 = vpop.f32.mrb[0].mxu0
    %v162 = vadd.f32 %v73, %v161
    %163 = vmatprep.mubr.f32.mxu0 0.0
    %164 = vmatmul.mubr.f32.gmra.mrb[0].mxu0 %v91
    %v165 = vpop.f32.mrb[0].mxu0
    %v166 = vadd.f32 %v69, %v165
    %v167 = vpop.f32.mrb[0].mxu0
    %v168 = vadd.f32 %v73, %v167
    %169 = vdwg.mxu0
    %170 = vmatprep.subr.mxu0 %v35
    %171 = vmatpush1.msra.mxu0 %v34
    %172 = vmatprep.subr.mxu0 %v39
    %173 = vmatpush1.msra.mxu0 %v38
    %174 = vmatprep.subr.mxu0 %v43
    %175 = vmatpush1.msra.mxu0 %v42
    %176 = vmatprep.subr.mxu0 %v47
    %177 = vmatpush1.msra.mxu0 %v46
    %178 = vmatprep.subr.mxu0 %v51
    %179 = vmatpush1.msra.mxu0 %v50
    %180 = vmatprep.subr.mxu0 %v55
    %181 = vmatpush1.msra.mxu0 %v54
    %182 = vmatprep.subr.mxu0 %v59
    %183 = vmatpush1.msra.mxu0 %v58
    %184 = vmatprep.subr.mxu0 %v63
    %185 = vmatpush1.msra.mxu0 %v62
    %186 = vmatprep.subr.mxu0 0.0
    %187 = vmatpush1.msra.mxu0 0.0
    %188 = vmatprep.subr.mxu0 0.0
    %189 = vmatpush1.msra.mxu0 0.0
    %190 = vmatprep.subr.mxu0 0.0
    %191 = vmatpush1.msra.mxu0 0.0
    %192 = vmatprep.subr.mxu0 0.0
    %193 = vmatpush1.msra.mxu0 0.0
    %194 = vmatprep.subr.mxu0 0.0
    %195 = vmatpush1.msra.mxu0 0.0
    %196 = vmatprep.subr.mxu0 0.0
    %197 = vmatpush1.msra.mxu0 0.0
    %198 = vmatprep.subr.mxu0 0.0
    %199 = vmatpush1.msra.mxu0 0.0
    %200 = vmatprep.subr.mxu0 0.0
    %201 = vmatpush1.msra.mxu0 0.0
    %202 = vmatprep.subr.mxu0 0.0
    %203 = vmatpush1.msra.mxu0 0.0
    %204 = vmatprep.subr.mxu0 0.0
    %205 = vmatpush1.msra.mxu0 0.0
    %206 = vmatprep.subr.mxu0 0.0
    %207 = vmatpush1.msra.mxu0 0.0
    %208 = vmatprep.subr.mxu0 0.0
    %209 = vmatpush1.msra.mxu0 0.0
    %210 = vmatprep.subr.mxu0 0.0
    %211 = vmatpush1.msra.mxu0 0.0
    %212 = vmatprep.subr.mxu0 0.0
    %213 = vmatpush1.msra.mxu0 0.0
    %214 = vmatprep.subr.mxu0 0.0
    %215 = vmatpush1.msra.mxu0 0.0
    %216 = vmatprep.subr.mxu0 0.0
    %217 = vmatpush1.msra.mxu0 0.0
    %218 = vmatprep.subr.mxu0 0.0
    %219 = vmatpush1.msra.mxu0 0.0
    %220 = vmatprep.subr.mxu0 0.0
    %221 = vmatpush1.msra.mxu0 0.0
    %222 = vmatprep.subr.mxu0 0.0
    %223 = vmatpush1.msra.mxu0 0.0
    %224 = vmatprep.subr.mxu0 0.0
    %225 = vmatpush1.msra.mxu0 0.0
    %226 = vmatprep.subr.mxu0 0.0
    %227 = vmatpush1.msra.mxu0 0.0
    %228 = vmatprep.subr.mxu0 0.0
    %229 = vmatpush1.msra.mxu0 0.0
    %230 = vmatprep.subr.mxu0 0.0
    %231 = vmatpush1.msra.mxu0 0.0
    %232 = vmatprep.subr.mxu0 0.0
    %233 = vmatpush1.msra.mxu0 0.0
    %234 = vmatprep.mubr.f32.mxu0 0.0
    %235 = vmatmul.mubr.f32.gmra.mrb[0].mxu0 %v88
    %v236 = vpop.f32.mrb[0].mxu0
    %v237 = vadd.f32 %v77, %v236
    %v238 = vpop.f32.mrb[0].mxu0
    %v239 = vadd.f32 %v81, %v238
    %240 = vmatprep.mubr.f32.mxu0 0.0
    %241 = vmatmul.mubr.f32.gmra.mrb[0].mxu0 %v91
    %v242 = vpop.f32.mrb[0].mxu0
    %v243 = vadd.f32 %v77, %v242
    %v244 = vpop.f32.mrb[0].mxu0
    %v245 = vadd.f32 %v81, %v244
    %246 = vdwg.mxu0
    %v247 = vmax.f32 %v160, 0.0
    %v248 = vmax.f32 %v162, 0.0
    %v249 = vmax.f32 %v237, 0.0
    %v250 = vmax.f32 %v239, 0.0
    %v251 = vmax.f32 %v166, 0.0
    %v252 = vmax.f32 %v168, 0.0
    %v253 = vmax.f32 %v243, 0.0
    %v254 = vmax.f32 %v245, 0.0
    %v255 = vld [vmem:[%s3] sm:$0xff]
    %v256 = vld [vmem:[%s3 + $0x8] sm:$0xff]
    %v257 = vld [vmem:[%s3 + $0x10] sm:$0xff]
    %v258 = vld [vmem:[%s3 + $0x18] sm:$0xff]
    %v259 = vld [vmem:[%s3 + $0x20] sm:$0xff]
    %v260 = vld [vmem:[%s3 + $0x28] sm:$0xff]
    %v261 = vld [vmem:[%s3 + $0x30] sm:$0xff]
    %v262 = vld [vmem:[%s3 + $0x38] sm:$0xff]
    %v263 = vld [vmem:[%s3 + $0x40] sm:$0xff]
    %v264 = vld [vmem:[%s3 + $0x48] sm:$0xff]
    %v265 = vld [vmem:[%s3 + $0x50] sm:$0xff]
    %v266 = vld [vmem:[%s3 + $0x58] sm:$0xff]
    %v267 = vld [vmem:[%s3 + $0x60] sm:$0xff]
    %v268 = vld [vmem:[%s3 + $0x68] sm:$0xff]
    %v269 = vld [vmem:[%s3 + $0x70] sm:$0xff]
    %v270 = vld [vmem:[%s3 + $0x78] sm:$0xff]
    %v271 = vld [vmem:[%s3 + $0x80] sm:$0xff]
    %v272 = vld [vmem:[%s3 + $0x88] sm:$0xff]
    %v273 = vld [vmem:[%s3 + $0x90] sm:$0xff]
    %v274 = vld [vmem:[%s3 + $0x98] sm:$0xff]
    %v275 = vld [vmem:[%s3 + $0xa0] sm:$0xff]
    %v276 = vld [vmem:[%s3 + $0xa8] sm:$0xff]
    %v277 = vld [vmem:[%s3 + $0xb0] sm:$0xff]
    %v278 = vld [vmem:[%s3 + $0xb8] sm:$0xff]
    %v279 = vld [vmem:[%s3 + $0xc0] sm:$0xff]
    %v280 = vld [vmem:[%s3 + $0xc8] sm:$0xff]
    %v281 = vld [vmem:[%s3 + $0xd0] sm:$0xff]
    %v282 = vld [vmem:[%s3 + $0xd8] sm:$0xff]
    %v283 = vld [vmem:[%s3 + $0xe0] sm:$0xff]
    %v284 = vld [vmem:[%s3 + $0xe8] sm:$0xff]
    %v285 = vld [vmem:[%s3 + $0xf0] sm:$0xff]
    %v286 = vld [vmem:[%s3 + $0xf8] sm:$0xff]
    %v287 = vld [vmem:[%s3 + $0x100] sm:$0xff]
    %v288 = vld [vmem:[%s3 + $0x108] sm:$0xff]
    %v289 = vld [vmem:[%s3 + $0x110] sm:$0xff]
    %v290 = vld [vmem:[%s3 + $0x118] sm:$0xff]
    %v291 = vld [vmem:[%s3 + $0x120] sm:$0xff]
    %v292 = vld [vmem:[%s3 + $0x128] sm:$0xff]
    %v293 = vld [vmem:[%s3 + $0x130] sm:$0xff]
    %v294 = vld [vmem:[%s3 + $0x138] sm:$0xff]
    %v295 = vld [vmem:[%s3 + $0x140] sm:$0xff]
    %v296 = vld [vmem:[%s3 + $0x148] sm:$0xff]
    %v297 = vld [vmem:[%s3 + $0x150] sm:$0xff]
    %v298 = vld [vmem:[%s3 + $0x158] sm:$0xff]
    %v299 = vld [vmem:[%s3 + $0x160] sm:$0xff]
    %v300 = vld [vmem:[%s3 + $0x168] sm:$0xff]
    %v301 = vld [vmem:[%s3 + $0x170] sm:$0xff]
    %v302 = vld [vmem:[%s3 + $0x178] sm:$0xff]
    %v303 = vld [vmem:[%s3 + $0x180] sm:$0xff]
    %v304 = vld [vmem:[%s3 + $0x188] sm:$0xff]
    %v305 = vld [vmem:[%s3 + $0x190] sm:$0xff]
    %v306 = vld [vmem:[%s3 + $0x198] sm:$0xff]
    %v307 = vld [vmem:[%s3 + $0x1a0] sm:$0xff]
    %v308 = vld [vmem:[%s3 + $0x1a8] sm:$0xff]
    %v309 = vld [vmem:[%s3 + $0x1b0] sm:$0xff]
    %v310 = vld [vmem:[%s3 + $0x1b8] sm:$0xff]
    %v311 = vld [vmem:[%s3 + $0x1c0] sm:$0xff]
    %v312 = vld [vmem:[%s3 + $0x1c8] sm:$0xff]
    %v313 = vld [vmem:[%s3 + $0x1d0] sm:$0xff]
    %v314 = vld [vmem:[%s3 + $0x1d8] sm:$0xff]
    %v315 = vld [vmem:[%s3 + $0x1e0] sm:$0xff]
    %v316 = vld [vmem:[%s3 + $0x1e8] sm:$0xff]
    %v317 = vld [vmem:[%s3 + $0x1f0] sm:$0xff]
    %v318 = vld [vmem:[%s3 + $0x1f8] sm:$0xff]
    %v319 = vld [vmem:[%s4] sm:$0x1]
    %v321 = vlaneseq
    %v322 = vshrl.u32 %v321, 7
    %v323 = vsub.s32 0, %v322
    %v324 = vrot.slane %v319, %v323
    %326 = vmatprep.subr.mxu0 0.0
    %327 = vmatpush1.msra.mxu0 %v255
    %328 = vmatprep.subr.mxu0 0.0
    %329 = vmatpush1.msra.mxu0 %v256
    %330 = vmatprep.subr.mxu0 0.0
    %331 = vmatpush1.msra.mxu0 %v257
    %332 = vmatprep.subr.mxu0 0.0
    %333 = vmatpush1.msra.mxu0 %v258
    %334 = vmatprep.subr.mxu0 0.0
    %335 = vmatpush1.msra.mxu0 %v259
    %336 = vmatprep.subr.mxu0 0.0
    %337 = vmatpush1.msra.mxu0 %v260
    %338 = vmatprep.subr.mxu0 0.0
    %339 = vmatpush1.msra.mxu0 %v261
    %340 = vmatprep.subr.mxu0 0.0
    %341 = vmatpush1.msra.mxu0 %v262
    %342 = vmatprep.subr.mxu0 0.0
    %343 = vmatpush1.msra.mxu0 %v263
    %344 = vmatprep.subr.mxu0 0.0
    %345 = vmatpush1.msra.mxu0 %v264
    %346 = vmatprep.subr.mxu0 0.0
    %347 = vmatpush1.msra.mxu0 %v265
    %348 = vmatprep.subr.mxu0 0.0
    %349 = vmatpush1.msra.mxu0 %v266
    %350 = vmatprep.subr.mxu0 0.0
    %351 = vmatpush1.msra.mxu0 %v267
    %352 = vmatprep.subr.mxu0 0.0
    %353 = vmatpush1.msra.mxu0 %v268
    %354 = vmatprep.subr.mxu0 0.0
    %355 = vmatpush1.msra.mxu0 %v269
    %356 = vmatprep.subr.mxu0 0.0
    %357 = vmatpush1.msra.mxu0 %v270
    %358 = vmatprep.subr.mxu0 0.0
    %359 = vmatpush1.msra.mxu0 %v271
    %360 = vmatprep.subr.mxu0 0.0
    %361 = vmatpush1.msra.mxu0 %v272
    %362 = vmatprep.subr.mxu0 0.0
    %363 = vmatpush1.msra.mxu0 %v273
    %364 = vmatprep.subr.mxu0 0.0
    %365 = vmatpush1.msra.mxu0 %v274
    %366 = vmatprep.subr.mxu0 0.0
    %367 = vmatpush1.msra.mxu0 %v275
    %368 = vmatprep.subr.mxu0 0.0
    %369 = vmatpush1.msra.mxu0 %v276
    %370 = vmatprep.subr.mxu0 0.0
    %371 = vmatpush1.msra.mxu0 %v277
    %372 = vmatprep.subr.mxu0 0.0
    %373 = vmatpush1.msra.mxu0 %v278
    %374 = vmatprep.subr.mxu0 0.0
    %375 = vmatpush1.msra.mxu0 %v279
    %376 = vmatprep.subr.mxu0 0.0
    %377 = vmatpush1.msra.mxu0 %v280
    %378 = vmatprep.subr.mxu0 0.0
    %379 = vmatpush1.msra.mxu0 %v281
    %380 = vmatprep.subr.mxu0 0.0
    %381 = vmatpush1.msra.mxu0 %v282
    %382 = vmatprep.subr.mxu0 0.0
    %383 = vmatpush1.msra.mxu0 %v283
    %384 = vmatprep.subr.mxu0 0.0
    %385 = vmatpush1.msra.mxu0 %v284
    %386 = vmatprep.subr.mxu0 0.0
    %387 = vmatpush1.msra.mxu0 %v285
    %388 = vmatprep.subr.mxu0 0.0
    %389 = vmatpush1.msra.mxu0 %v286
    %390 = vmatprep.mubr.f32.mxu0 %v248
    %391 = vmatmul.mubr.f32.gmra.mrb[0].mxu0 %v247
    %v392 = vpop.f32.mrb[0].mxu0
    %v393 = vadd.f32 %v324, %v392
    %v394 = vpop.f32.mrb[0].mxu0
    %395 = vmatprep.mubr.f32.mxu0 %v252
    %396 = vmatmul.mubr.f32.gmra.mrb[0].mxu0 %v251
    %v397 = vpop.f32.mrb[0].mxu0
    %v398 = vadd.f32 %v324, %v397
    %v399 = vpop.f32.mrb[0].mxu0
    %400 = vdwg.mxu0
    %401 = vmatprep.subr.mxu0 0.0
    %402 = vmatpush1.msra.mxu0 %v287
    %403 = vmatprep.subr.mxu0 0.0
    %404 = vmatpush1.msra.mxu0 %v288
    %405 = vmatprep.subr.mxu0 0.0
    %406 = vmatpush1.msra.mxu0 %v289
    %407 = vmatprep.subr.mxu0 0.0
    %408 = vmatpush1.msra.mxu0 %v290
    %409 = vmatprep.subr.mxu0 0.0
    %410 = vmatpush1.msra.mxu0 %v291
    %411 = vmatprep.subr.mxu0 0.0
    %412 = vmatpush1.msra.mxu0 %v292
    %413 = vmatprep.subr.mxu0 0.0
    %414 = vmatpush1.msra.mxu0 %v293
    %415 = vmatprep.subr.mxu0 0.0
    %416 = vmatpush1.msra.mxu0 %v294
    %417 = vmatprep.subr.mxu0 0.0
    %418 = vmatpush1.msra.mxu0 %v295
    %419 = vmatprep.subr.mxu0 0.0
    %420 = vmatpush1.msra.mxu0 %v296
    %421 = vmatprep.subr.mxu0 0.0
    %422 = vmatpush1.msra.mxu0 %v297
    %423 = vmatprep.subr.mxu0 0.0
    %424 = vmatpush1.msra.mxu0 %v298
    %425 = vmatprep.subr.mxu0 0.0
    %426 = vmatpush1.msra.mxu0 %v299
    %427 = vmatprep.subr.mxu0 0.0
    %428 = vmatpush1.msra.mxu0 %v300
    %429 = vmatprep.subr.mxu0 0.0
    %430 = vmatpush1.msra.mxu0 %v301
    %431 = vmatprep.subr.mxu0 0.0
    %432 = vmatpush1.msra.mxu0 %v302
    %433 = vmatprep.subr.mxu0 0.0
    %434 = vmatpush1.msra.mxu0 %v303
    %435 = vmatprep.subr.mxu0 0.0
    %436 = vmatpush1.msra.mxu0 %v304
    %437 = vmatprep.subr.mxu0 0.0
    %438 = vmatpush1.msra.mxu0 %v305
    %439 = vmatprep.subr.mxu0 0.0
    %440 = vmatpush1.msra.mxu0 %v306
    %441 = vmatprep.subr.mxu0 0.0
    %442 = vmatpush1.msra.mxu0 %v307
    %443 = vmatprep.subr.mxu0 0.0
    %444 = vmatpush1.msra.mxu0 %v308
    %445 = vmatprep.subr.mxu0 0.0
    %446 = vmatpush1.msra.mxu0 %v309
    %447 = vmatprep.subr.mxu0 0.0
    %448 = vmatpush1.msra.mxu0 %v310
    %449 = vmatprep.subr.mxu0 0.0
    %450 = vmatpush1.msra.mxu0 %v311
    %451 = vmatprep.subr.mxu0 0.0
    %452 = vmatpush1.msra.mxu0 %v312
    %453 = vmatprep.subr.mxu0 0.0
    %454 = vmatpush1.msra.mxu0 %v313
    %455 = vmatprep.subr.mxu0 0.0
    %456 = vmatpush1.msra.mxu0 %v314
    %457 = vmatprep.subr.mxu0 0.0
    %458 = vmatpush1.msra.mxu0 %v315
    %459 = vmatprep.subr.mxu0 0.0
    %460 = vmatpush1.msra.mxu0 %v316
    %461 = vmatprep.subr.mxu0 0.0
    %462 = vmatpush1.msra.mxu0 %v317
    %463 = vmatprep.subr.mxu0 0.0
    %464 = vmatpush1.msra.mxu0 %v318
    %465 = vmatprep.mubr.f32.mxu0 %v250
    %466 = vmatmul.mubr.f32.gmra.mrb[0].mxu0 %v249
    %v467 = vpop.f32.mrb[0].mxu0
    %v468 = vadd.f32 %v393, %v467
    %v469 = vpop.f32.mrb[0].mxu0
    %470 = vmatprep.mubr.f32.mxu0 %v254
    %471 = vmatmul.mubr.f32.gmra.mrb[0].mxu0 %v253
    %v472 = vpop.f32.mrb[0].mxu0
    %v473 = vadd.f32 %v398, %v472
    %v474 = vpop.f32.mrb[0].mxu0
    %475 = vdwg.mxu0
    %v476 = vmax.f32 %v468, 0.0
    %v477 = vmax.f32 %v473, 0.0
    %v478 = vld [vmem:[%s5] sm:$0xff]
    %v479 = vld [vmem:[%s5 + $0x8] sm:$0xf]
    %481 = vset.pattern.permute.xlu0 0
    %482 = vperm.xlu0 %481, %v478
    %v483 = vpop.permute.xlu0 %482
    %486 = vset.pattern.permute.xlu0 0
    %487 = vperm.xlu0 %486, %v479
    %v488 = vpop.permute.xlu0 %487
    %v490 = vmul.f32 %v476, %v483
    %v491 = vmul.f32 %v477, %v488
    %v492 = vld [vmem:[%s6] sm:$0xff]
    %v493 = vld [vmem:[%s6 + $0x8] sm:$0xff]
    %v494 = vld [vmem:[%s6 + $0x10] sm:$0xff]
    %v495 = vld [vmem:[%s6 + $0x18] sm:$0xff]
    %v496 = vld [vmem:[%s6 + $0x20] sm:$0xff]
    %v497 = vld [vmem:[%s6 + $0x28] sm:$0xff]
    %v498 = vld [vmem:[%s6 + $0x30] sm:$0xff]
    %v499 = vld [vmem:[%s6 + $0x38] sm:$0xff]
    %s500 = scalar_lea.vmem %s6, 64
    %v501 = vld [vmem:[%s500] sm:$0xff]
    %v502 = vld [vmem:[%s500 + $0x8] sm:$0xff]
    %v503 = vld [vmem:[%s500 + $0x10] sm:$0xff]
    %v504 = vld [vmem:[%s500 + $0x18] sm:$0xff]
    %v505 = vld [vmem:[%s500 + $0x20] sm:$0xff]
    %v506 = vld [vmem:[%s500 + $0x28] sm:$0xff]
    %v507 = vld [vmem:[%s500 + $0x30] sm:$0xff]
    %v508 = vld [vmem:[%s500 + $0x38] sm:$0xff]
    %v510 = vrot.slane %v490, 4
    %vm511 = vcmask 261120
    %v512 = vsel %vm511, %v510, 0
    %514 = vmatprep.subr.mxu0 %v502
    %515 = vmatpush1.msra.mxu0 %v501
    %516 = vmatprep.subr.mxu0 %v504
    %517 = vmatpush1.msra.mxu0 %v503
    %518 = vmatprep.subr.mxu0 %v506
    %519 = vmatpush1.msra.mxu0 %v505
    %520 = vmatprep.subr.mxu0 %v508
    %521 = vmatpush1.msra.mxu0 %v507
    %522 = vmatprep.subr.mxu0 0.0
    %523 = vmatpush1.msra.mxu0 0.0
    %524 = vmatprep.subr.mxu0 0.0
    %525 = vmatpush1.msra.mxu0 0.0
    %526 = vmatprep.subr.mxu0 0.0
    %527 = vmatpush1.msra.mxu0 0.0
    %528 = vmatprep.subr.mxu0 0.0
    %529 = vmatpush1.msra.mxu0 0.0
    %530 = vmatprep.subr.mxu0 0.0
    %531 = vmatpush1.msra.mxu0 0.0
    %532 = vmatprep.subr.mxu0 0.0
    %533 = vmatpush1.msra.mxu0 0.0
    %534 = vmatprep.subr.mxu0 0.0
    %535 = vmatpush1.msra.mxu0 0.0
    %536 = vmatprep.subr.mxu0 0.0
    %537 = vmatpush1.msra.mxu0 0.0
    %538 = vmatprep.subr.mxu0 0.0
    %539 = vmatpush1.msra.mxu0 0.0
    %540 = vmatprep.subr.mxu0 0.0
    %541 = vmatpush1.msra.mxu0 0.0
    %542 = vmatprep.subr.mxu0 0.0
    %543 = vmatpush1.msra.mxu0 0.0
    %544 = vmatprep.subr.mxu0 0.0
    %545 = vmatpush1.msra.mxu0 0.0
    %546 = vmatprep.subr.mxu0 0.0
    %547 = vmatpush1.msra.mxu0 0.0
    %548 = vmatprep.subr.mxu0 0.0
    %549 = vmatpush1.msra.mxu0 0.0
    %550 = vmatprep.subr.mxu0 0.0
    %551 = vmatpush1.msra.mxu0 0.0
    %552 = vmatprep.subr.mxu0 0.0
    %553 = vmatpush1.msra.mxu0 0.0
    %554 = vmatprep.subr.mxu0 0.0
    %555 = vmatpush1.msra.mxu0 0.0
    %556 = vmatprep.subr.mxu0 0.0
    %557 = vmatpush1.msra.mxu0 0.0
    %558 = vmatprep.subr.mxu0 0.0
    %559 = vmatpush1.msra.mxu0 0.0
    %560 = vmatprep.subr.mxu0 0.0
    %561 = vmatpush1.msra.mxu0 0.0
    %562 = vmatprep.subr.mxu0 0.0
    %563 = vmatpush1.msra.mxu0 0.0
    %564 = vmatprep.subr.mxu0 0.0
    %565 = vmatpush1.msra.mxu0 0.0
    %566 = vmatprep.subr.mxu0 0.0
    %567 = vmatpush1.msra.mxu0 0.0
    %568 = vmatprep.subr.mxu0 0.0
    %569 = vmatpush1.msra.mxu0 0.0
    %570 = vmatprep.subr.mxu0 0.0
    %571 = vmatpush1.msra.mxu0 0.0
    %572 = vmatprep.subr.mxu0 0.0
    %573 = vmatpush1.msra.mxu0 0.0
    %574 = vmatprep.subr.mxu0 0.0
    %575 = vmatpush1.msra.mxu0 0.0
    %576 = vmatprep.subr.mxu0 0.0
    %577 = vmatpush1.msra.mxu0 0.0
    %578 = vmatprep.mubr.f32.mxu0 0.0
    %579 = vmatmul.mubr.f32.gmra.mrb[0].mxu0 %v512
    %v580 = vpop.f32.mrb[0].mxu0
    %v581 = vadd.f32 0.0, %v580
    %v582 = vpop.f32.mrb[0].mxu0
    %v583 = vadd.f32 0.0, %v582
    %584 = vdwg.mxu0
    %v585 = vsel %vm511, %v490, 0
    %587 = vmatprep.subr.mxu0 %v493
    %588 = vmatpush1.msra.mxu0 %v492
    %589 = vmatprep.subr.mxu0 %v495
    %590 = vmatpush1.msra.mxu0 %v494
    %591 = vmatprep.subr.mxu0 %v497
    %592 = vmatpush1.msra.mxu0 %v496
    %593 = vmatprep.subr.mxu0 %v499
    %594 = vmatpush1.msra.mxu0 %v498
    %595 = vmatprep.subr.mxu0 0.0
    %596 = vmatpush1.msra.mxu0 0.0
    %597 = vmatprep.subr.mxu0 0.0
    %598 = vmatpush1.msra.mxu0 0.0
    %599 = vmatprep.subr.mxu0 0.0
    %600 = vmatpush1.msra.mxu0 0.0
    %601 = vmatprep.subr.mxu0 0.0
    %602 = vmatpush1.msra.mxu0 0.0
    %603 = vmatprep.subr.mxu0 0.0
    %604 = vmatpush1.msra.mxu0 0.0
    %605 = vmatprep.subr.mxu0 0.0
    %606 = vmatpush1.msra.mxu0 0.0
    %607 = vmatprep.subr.mxu0 0.0
    %608 = vmatpush1.msra.mxu0 0.0
    %609 = vmatprep.subr.mxu0 0.0
    %610 = vmatpush1.msra.mxu0 0.0
    %611 = vmatprep.subr.mxu0 0.0
    %612 = vmatpush1.msra.mxu0 0.0
    %613 = vmatprep.subr.mxu0 0.0
    %614 = vmatpush1.msra.mxu0 0.0
    %615 = vmatprep.subr.mxu0 0.0
    %616 = vmatpush1.msra.mxu0 0.0
    %617 = vmatprep.subr.mxu0 0.0
    %618 = vmatpush1.msra.mxu0 0.0
    %619 = vmatprep.subr.mxu0 0.0
    %620 = vmatpush1.msra.mxu0 0.0
    %621 = vmatprep.subr.mxu0 0.0
    %622 = vmatpush1.msra.mxu0 0.0
    %623 = vmatprep.subr.mxu0 0.0
    %624 = vmatpush1.msra.mxu0 0.0
    %625 = vmatprep.subr.mxu0 0.0
    %626 = vmatpush1.msra.mxu0 0.0
    %627 = vmatprep.subr.mxu0 0.0
    %628 = vmatpush1.msra.mxu0 0.0
    %629 = vmatprep.subr.mxu0 0.0
    %630 = vmatpush1.msra.mxu0 0.0
    %631 = vmatprep.subr.mxu0 0.0
    %632 = vmatpush1.msra.mxu0 0.0
    %633 = vmatprep.subr.mxu0 0.0
    %634 = vmatpush1.msra.mxu0 0.0
    %635 = vmatprep.subr.mxu0 0.0
    %636 = vmatpush1.msra.mxu0 0.0
    %637 = vmatprep.subr.mxu0 0.0
    %638 = vmatpush1.msra.mxu0 0.0
    %639 = vmatprep.subr.mxu0 0.0
    %640 = vmatpush1.msra.mxu0 0.0
    %641 = vmatprep.subr.mxu0 0.0
    %642 = vmatpush1.msra.mxu0 0.0
    %643 = vmatprep.subr.mxu0 0.0
    %644 = vmatpush1.msra.mxu0 0.0
    %645 = vmatprep.subr.mxu0 0.0
    %646 = vmatpush1.msra.mxu0 0.0
    %647 = vmatprep.subr.mxu0 0.0
    %648 = vmatpush1.msra.mxu0 0.0
    %649 = vmatprep.subr.mxu0 0.0
    %650 = vmatpush1.msra.mxu0 0.0
    %651 = vmatprep.mubr.f32.mxu0 0.0
    %652 = vmatmul.mubr.f32.gmra.mrb[0].mxu0 %v585
    %v653 = vpop.f32.mrb[0].mxu0
    %v654 = vadd.f32 %v581, %v653
    %v655 = vpop.f32.mrb[0].mxu0
    %v656 = vadd.f32 %v583, %v655
    %657 = vdwg.mxu0
    %s658 = scalar_lea.vmem %s6, 128
    %v659 = vld [vmem:[%s658] sm:$0xff]
    %v660 = vld [vmem:[%s658 + $0x8] sm:$0xff]
    %v661 = vld [vmem:[%s658 + $0x10] sm:$0xff]
    %v662 = vld [vmem:[%s658 + $0x18] sm:$0xff]
    %v663 = vld [vmem:[%s658 + $0x20] sm:$0xff]
    %v664 = vld [vmem:[%s658 + $0x28] sm:$0xff]
    %v665 = vld [vmem:[%s658 + $0x30] sm:$0xff]
    %v666 = vld [vmem:[%s658 + $0x38] sm:$0xff]
    %v668 = vsel %vm511, %v491, 0
    %670 = vmatprep.subr.mxu0 %v660
    %671 = vmatpush1.msra.mxu0 %v659
    %672 = vmatprep.subr.mxu0 %v662
    %673 = vmatpush1.msra.mxu0 %v661
    %674 = vmatprep.subr.mxu0 %v664
    %675 = vmatpush1.msra.mxu0 %v663
    %676 = vmatprep.subr.mxu0 %v666
    %677 = vmatpush1.msra.mxu0 %v665
    %678 = vmatprep.subr.mxu0 0.0
    %679 = vmatpush1.msra.mxu0 0.0
    %680 = vmatprep.subr.mxu0 0.0
    %681 = vmatpush1.msra.mxu0 0.0
    %682 = vmatprep.subr.mxu0 0.0
    %683 = vmatpush1.msra.mxu0 0.0
    %684 = vmatprep.subr.mxu0 0.0
    %685 = vmatpush1.msra.mxu0 0.0
    %686 = vmatprep.subr.mxu0 0.0
    %687 = vmatpush1.msra.mxu0 0.0
    %688 = vmatprep.subr.mxu0 0.0
    %689 = vmatpush1.msra.mxu0 0.0
    %690 = vmatprep.subr.mxu0 0.0
    %691 = vmatpush1.msra.mxu0 0.0
    %692 = vmatprep.subr.mxu0 0.0
    %693 = vmatpush1.msra.mxu0 0.0
    %694 = vmatprep.subr.mxu0 0.0
    %695 = vmatpush1.msra.mxu0 0.0
    %696 = vmatprep.subr.mxu0 0.0
    %697 = vmatpush1.msra.mxu0 0.0
    %698 = vmatprep.subr.mxu0 0.0
    %699 = vmatpush1.msra.mxu0 0.0
    %700 = vmatprep.subr.mxu0 0.0
    %701 = vmatpush1.msra.mxu0 0.0
    %702 = vmatprep.subr.mxu0 0.0
    %703 = vmatpush1.msra.mxu0 0.0
    %704 = vmatprep.subr.mxu0 0.0
    %705 = vmatpush1.msra.mxu0 0.0
    %706 = vmatprep.subr.mxu0 0.0
    %707 = vmatpush1.msra.mxu0 0.0
    %708 = vmatprep.subr.mxu0 0.0
    %709 = vmatpush1.msra.mxu0 0.0
    %710 = vmatprep.subr.mxu0 0.0
    %711 = vmatpush1.msra.mxu0 0.0
    %712 = vmatprep.subr.mxu0 0.0
    %713 = vmatpush1.msra.mxu0 0.0
    %714 = vmatprep.subr.mxu0 0.0
    %715 = vmatpush1.msra.mxu0 0.0
    %716 = vmatprep.subr.mxu0 0.0
    %717 = vmatpush1.msra.mxu0 0.0
    %718 = vmatprep.subr.mxu0 0.0
    %719 = vmatpush1.msra.mxu0 0.0
    %720 = vmatprep.subr.mxu0 0.0
    %721 = vmatpush1.msra.mxu0 0.0
    %722 = vmatprep.subr.mxu0 0.0
    %723 = vmatpush1.msra.mxu0 0.0
    %724 = vmatprep.subr.mxu0 0.0
    %725 = vmatpush1.msra.mxu0 0.0
    %726 = vmatprep.subr.mxu0 0.0
    %727 = vmatpush1.msra.mxu0 0.0
    %728 = vmatprep.subr.mxu0 0.0
    %729 = vmatpush1.msra.mxu0 0.0
    %730 = vmatprep.subr.mxu0 0.0
    %731 = vmatpush1.msra.mxu0 0.0
    %732 = vmatprep.subr.mxu0 0.0
    %733 = vmatpush1.msra.mxu0 0.0
    %734 = vmatprep.mubr.f32.mxu0 0.0
    %735 = vmatmul.mubr.f32.gmra.mrb[0].mxu0 %v668
    %v736 = vpop.f32.mrb[0].mxu0
    %v737 = vadd.f32 0.0, %v736
    %v738 = vpop.f32.mrb[0].mxu0
    %v739 = vadd.f32 0.0, %v738
    %740 = vdwg.mxu0
    %v741 = vadd.f32 %v654, %v737
    %v742 = vadd.f32 %v656, %v739
    %v743 = vld [vmem:[%s7] sm:$0x3]
    %v745 = vlaneseq
    %v746 = vshrl.u32 %v745, 7
    %v747 = vsub.s32 0, %v746
    %v748 = vrot.slane %v743, %v747
    %v749 = vlaneseq
    %v750 = vshrl.u32 %v749, 7
    %v751 = vsub.s32 1, %v750
    %v752 = vrot.slane %v743, %v751
    %v755 = vadd.f32 %v741, %v748
    %v756 = vadd.f32 %v742, %v752
    %v757 = vxor.u32 %v755, 2147483648
    %v758 = vxor.u32 %v756, 2147483648
    %v759 = vmul.f32 %v757, 1.442695
    %v760 = vpow.pop %v759
    %v761 = vmul.f32 %v758, 1.442695
    %v762 = vpow.pop %v761
    %v763 = vadd.f32 %v760, 1.0
    %v764 = vadd.f32 %v762, 1.0
    %v765 = vrcp.pop %v763
    %v766 = vmul.f32 1.0, %v765
    %v767 = vrcp.pop %v764
    %v768 = vmul.f32 1.0, %v767
    %v771 = vcombine.low %v766, %v768
    %773 = vst [vmem:[#allocation2] sm:$0xff] %v771
    // Predicated region
    $region34: #{sodgo_interacte_forward.1} parent=1 // pred_check
      _
    $region35: #{sodgo_interacte_forward.1} parent=1 // pred_check_branch
      %775 = sbr.rel (0) target = $region37
    $region36: #{sodgo_interacte_forward.1} parent=1 // pred_region
      %s777 = ssub.s32 128, 128
      %778 = vsyncadd [#allocation3], %s777
      %s780 = sshll.u32 [#allocation2], 4
      %s781 = int_to_ptr.vmem [resolvable:$true] %s780
      %783 = dma.vmem_to_hbm [thread:$0]  %s781, 128, %s8, [#allocation3]
    $region37: #{sodgo_interacte_forward.1} parent=1 // pred_fallthru
      _
    // Predicated region
    $region38: #{sodgo_interacte_forward.1} parent=1 // pred_check
      _
    $region39: #{sodgo_interacte_forward.1} parent=1 // pred_check_branch
      %785 = sbr.rel (0) target = $region41
    $region40: #{sodgo_interacte_forward.1} parent=1 // pred_region
      %786 = dma.done [#allocation3], 128
    $region41: #{sodgo_interacte_forward.1} parent=1 // pred_fallthru
      _
    %787 = vsyncpa [#allocation3], 1

</llo_original>
